<compile_context>
chip_gen: v5e
topology: v5e:2x2
jax: 0.10.0
libtpu: 0.0.40
codegen_flags: <defaults>
</compile_context>

<pallas_src>
import jax
import jax.numpy as jnp
from jax.experimental import pallas as pl
from jax.experimental.pallas import tpu as pltpu


def _decoder_argmax_kernel(x_ref, wt_ref, b_ref, o_ref):
    # x_ref: (C, t) f32 | wt_ref: (K, C) f32 | b_ref: (K, 1) f32 | o_ref: (1, t) i32
    logits = jnp.dot(wt_ref[...], x_ref[...],
                     preferred_element_type=jnp.float32)          # (K, t)
    logits = logits + b_ref[...]                                  # lane-broadcast bias
    k = logits.shape[0]
    # First-occurrence argmax over the K (sublane) axis, matching torch.argmax.
    m = jnp.max(logits, axis=0, keepdims=True)                    # (1, t)
    row = jax.lax.broadcasted_iota(jnp.int32, logits.shape, 0)    # class index per row
    idx = jnp.min(jnp.where(logits == m, row, k), axis=0, keepdims=True)
    o_ref[...] = idx.astype(jnp.int32)


def _decoder_argmax(x, weight_t, bias_col, *, max_tile=4096):
    """x: (B, C, HW) f32, weight_t: (K, C) f32, bias_col: (K, 1) f32 -> (B, 1, HW) i32."""
    b, c, hw = x.shape
    k = weight_t.shape[0]
    # Lane-dense tile: a multiple of 128, capped for VMEM (C*t*4 bytes per block).
    t = min(max_tile, pl.cdiv(hw, 128) * 128)
    grid = (b, pl.cdiv(hw, t))

    cost = pl.CostEstimate(
        flops=2 * b * hw * c * k,
        transcendentals=0,
        bytes_accessed=b * c * hw * 4 + b * hw * 4 + (c * k + k) * 4,
    )

    return pl.pallas_call(
        _decoder_argmax_kernel,
        out_shape=jax.ShapeDtypeStruct((b, 1, hw), jnp.int32),
        grid_spec=pltpu.PrefetchScalarGridSpec(
            num_scalar_prefetch=0,
            grid=grid,
            in_specs=[
                pl.BlockSpec((None, c, t), lambda i, j: (i, 0, j)),  # x slab (C, t)
                pl.BlockSpec((k, c), lambda i, j: (0, 0)),           # W^T, resident
                pl.BlockSpec((k, 1), lambda i, j: (0, 0)),           # bias, resident
            ],
            out_specs=pl.BlockSpec((None, 1, t), lambda i, j: (i, 0, j)),
        ),
        compiler_params=pltpu.CompilerParams(
            dimension_semantics=("parallel", "parallel")),
        cost_estimate=cost,
    )(x, weight_t, bias_col)


def linear_postprocessor(samples, targets, weight, bias):
    """samples: (B, C, H, W) f32 (NCHW), targets: (B, H, W) int labels.
    weight: (C, K) f32 (torch Conv2d(C, K, 1) weight (K,C,1,1) reshaped), bias: (K,) f32.
    Returns {'preds': (B, H, W) int32, 'target': (B, H, W) int32}."""
    b, c, h, w = samples.shape
    k = weight.shape[1]
    x = samples.reshape(b, c, h * w)            # free NCHW view — no transpose pass
    preds = _decoder_argmax(x, weight.T, bias.reshape(k, 1))
    preds = preds.reshape(b, h, w)
    # TODO(synk): torch returns int64 preds/targets; int64 on TPU is emulated and needs
    # the global jax_enable_x64 flag — kept int32 here, cast at the API boundary if needed.
    return {"preds": preds, "target": targets.astype(jnp.int32)}


if __name__ == "__main__":
    key = jax.random.PRNGKey(0)
    B, C, H, W = 2, 32, 16, 16   # batch, embed channels, spatial
    K = 8                        # number of segmentation classes

    k1, k2, k3, k4 = jax.random.split(key, 4)
    samples = jax.random.normal(k1, (B, C, H, W), dtype=jnp.float32)
    targets = jax.random.randint(k2, (B, H, W), 0, K, dtype=jnp.int32)
    weight = jax.random.normal(k3, (C, K), dtype=jnp.float32) * 0.02
    bias = jax.random.normal(k4, (K,), dtype=jnp.float32) * 0.01

    out = linear_postprocessor(samples, targets, weight, bias)
    jax.block_until_ready(out)

    # Pure-JAX reference.
    logits_ref = jnp.einsum("bchw,ck->bkhw", samples, weight) + bias[None, :, None, None]
    preds_ref = jnp.argmax(logits_ref, axis=1).astype(out["preds"].dtype)
    assert out["preds"].shape == (B, H, W)
    assert bool(jnp.all(out["preds"] == preds_ref))
    assert bool(jnp.all(out["target"] == targets))
    print("KERNEL_OK")
</pallas_src>

<mosaic_0001>
module attributes {stable_mosaic.version = 11 : i64} {
  func.func @_decoder_argmax_kernel(%arg0: i32, %arg1: i32, %arg2: memref<1x32x256xf32, #tpu.memory_space<vmem>>, %arg3: memref<8x32xf32, #tpu.memory_space<vmem>>, %arg4: memref<8x1xf32, #tpu.memory_space<vmem>>, %arg5: memref<1x1x256xi32, #tpu.memory_space<vmem>>) attributes {dimension_semantics = [#tpu.dimension_semantics<parallel>, #tpu.dimension_semantics<parallel>], iteration_bounds = array<i64: 2, 1>, scalar_prefetch = 0 : i64, scratch_operands = 0 : i64, tpu.core_type = #tpu.core_type<tc>, window_params = [{transform_indices = @transform_0, window_bounds = array<i64: 1, 32, 256>}, {pipeline_mode = #tpu.pipeline_mode<synchronous>, transform_indices = @transform_1, window_bounds = array<i64: 8, 32>}, {pipeline_mode = #tpu.pipeline_mode<synchronous>, transform_indices = @transform_2, window_bounds = array<i64: 8, 1>}, {transform_indices = @transform_3, window_bounds = array<i64: 1, 1, 256>}]} {
    %c0 = arith.constant 0 : index
    %c0_0 = arith.constant 0 : index
    %0 = vector.load %arg3[%c0, %c0_0] : memref<8x32xf32, #tpu.memory_space<vmem>>, vector<8x32xf32>
    %c0_1 = arith.constant 0 : index
    %c0_2 = arith.constant 0 : index
    %c0_3 = arith.constant 0 : index
    %1 = vector.load %arg2[%c0_1, %c0_2, %c0_3] : memref<1x32x256xf32, #tpu.memory_space<vmem>>, vector<1x32x256xf32>
    %2 = vector.shape_cast %1 : vector<1x32x256xf32> to vector<32x256xf32>
    %cst = arith.constant dense<0.000000e+00> : vector<8x256xf32>
    %3 = tpu.matmul %0, %2, %cst {dimension_numbers = #tpu.dot_dimension_numbers<[1], [0], [0], [1], [0, 0, 1, 1], [], []>} : vector<8x32xf32>, vector<32x256xf32>, vector<8x256xf32> -> vector<8x256xf32>
    %c0_4 = arith.constant 0 : index
    %c0_5 = arith.constant 0 : index
    %4 = vector.load %arg4[%c0_4, %c0_5] : memref<8x1xf32, #tpu.memory_space<vmem>>, vector<8x1xf32>
    %5 = vector.broadcast %4 : vector<8x1xf32> to vector<8x256xf32>
    %6 = arith.addf %3, %5 : vector<8x256xf32>
    %cst_6 = arith.constant dense<0xFF800000> : vector<256xf32>
    %7 = vector.multi_reduction <maximumf>, %6, %cst_6 [0] : vector<8x256xf32> to vector<256xf32>
    %8 = vector.shape_cast %7 : vector<256xf32> to vector<1x256xf32>
    %9 = tpu.iota {dimensions = array<i32: 0>} : vector<8x256xi32>
    %10 = vector.broadcast %8 : vector<1x256xf32> to vector<8x256xf32>
    %11 = arith.cmpf oeq, %6, %10 : vector<8x256xf32>
    %c8_i32 = arith.constant 8 : i32
    %12 = vector.broadcast %c8_i32 : i32 to vector<8x256xi32>
    %13 = arith.select %11, %9, %12 : vector<8x256xi1>, vector<8x256xi32>
    %cst_7 = arith.constant dense<2147483647> : vector<256xi32>
    %14 = vector.multi_reduction <minsi>, %13, %cst_7 [0] : vector<8x256xi32> to vector<256xi32>
    %15 = vector.shape_cast %14 : vector<256xi32> to vector<1x256xi32>
    %c0_8 = arith.constant 0 : index
    %c0_9 = arith.constant 0 : index
    %c0_10 = arith.constant 0 : index
    %16 = vector.load %arg5[%c0_8, %c0_9, %c0_10] : memref<1x1x256xi32, #tpu.memory_space<vmem>>, vector<1x1x256xi32>
    %17 = vector.shape_cast %16 : vector<1x1x256xi32> to vector<1x256xi32>
    %18 = vector.shape_cast %15 : vector<1x256xi32> to vector<1x1x256xi32>
    tpu.vector_store %arg5[%c0_8, %c0_9, %c0_10], %18 {strides = array<i32>} : memref<1x1x256xi32, #tpu.memory_space<vmem>>, vector<1x1x256xi32>,
    return
  }
  func.func @transform_0(%arg0: i32, %arg1: i32) -> (i32, i32, i32) {
    %c0_i32 = arith.constant 0 : i32
    %c0_i32_0 = arith.constant 0 : i32
    return %arg0, %c0_i32, %arg1 : i32, i32, i32
  }
  func.func @transform_1(%arg0: i32, %arg1: i32) -> (i32, i32) {
    %c0_i32 = arith.constant 0 : i32
    %c0_i32_0 = arith.constant 0 : i32
    %c0_i32_1 = arith.constant 0 : i32
    return %c0_i32, %c0_i32_0 : i32, i32
  }
  func.func @transform_2(%arg0: i32, %arg1: i32) -> (i32, i32) {
    %c0_i32 = arith.constant 0 : i32
    %c0_i32_0 = arith.constant 0 : i32
    %c0_i32_1 = arith.constant 0 : i32
    return %c0_i32, %c0_i32_0 : i32, i32
  }
  func.func @transform_3(%arg0: i32, %arg1: i32) -> (i32, i32, i32) {
    %c0_i32 = arith.constant 0 : i32
    %c0_i32_0 = arith.constant 0 : i32
    return %arg0, %c0_i32, %arg1 : i32, i32, i32
  }
}

</mosaic_0001>

<llo_original>
// kernel: tpu_custom_call.1
$region0: #{tpu_custom_call.1}
  #allocation0 [shape = 'u32[]', space=smem, size = 0x4, offset = 0x4, fixed_abs, tag = 'smem constant byte address 0x4 - core index']
  #allocation1 [shape = 'u32[72,128]{1,0:T(1,128)}', space=vmem, size = 0x9000, scoped, tag = 'internal scratch']
  %s0 = inlined_call_operand.hbm [shape: f32[2,32,256], index: 0, kind: input, shape index: {}]
  %s1 = inlined_call_operand.vmem [shape: f32[8,32], index: 1, kind: input, shape index: {}]
  %s2 = inlined_call_operand.vmem [shape: f32[8,1], index: 2, kind: input, shape index: {}]
  %s3 = inlined_call_operand.hbm [shape: s32[2,1,256], index: 3, kind: output, shape index: {}]
  %s4 = sld [smem:[#allocation0]]
  $region49: #{tpu_custom_call.1} parent=0
    _
  %s6 = ssub.s32 1, %s4
  %s7 = scalar_select 0, %s6, %s4
  $region1: #{tpu_custom_call.1} parent=0
    #allocation2 [shape = 'u8[65536]{0}', space=vmem, size = 0x10000, scoped, tag = 'input window, operand 0']
    #allocation3 [shape = 's32[2]{0}', space=sflag, size = 0x8, scoped, tag = 'scoped memory for tpu_custom_call.1']
    #allocation4 [shape = 's32[2]{0}', space=sflag, size = 0x8, scoped, tag = 'scoped memory for tpu_custom_call.1']
    #allocation5 [shape = 'u8[2048]{0}', space=vmem, size = 0x800, scoped, tag = 'output window, operand 0']
    %8 = vsyncpa [#allocation3], 0
    %s9 = scalar_lea.sflag [#allocation3], 1
    %10 = vsyncpa %s9, 0
    %11 = vsyncpa [#allocation4], 0
    %s12 = scalar_lea.sflag [#allocation4], 1
    %13 = vsyncpa %s12, 0
    loop: start=0, step=1, limit=4
    $region2: #{tpu_custom_call.1} parent=1 // loop_pre_header
      _
    $region3: #{tpu_custom_call.1} parent=1 // loop_header
      %s15 = sphi 0, %s19
      %p16 = scmp.ge.s32.totalorder %s15, 4
      %s22 = sphi 0, %s34
      %s23 = sphi 0, %s30
      %s24 = sphi 0, %s22
      %s25 = sphi 0, %s23
      %s26 = sphi 0, %s24
      %s27 = sphi 0, %s25
      %s39 = sphi 0, %s41
      %s42 = sphi 0, %s39
      %s43 = sphi 0, %s42
      %s59 = sphi 0, %s43
      %s63 = sphi 0, %s63
      %s65 = sphi 0, %s63
      %s66 = sphi 0, %s65
      %s80 = sphi 0, %s66
      %s84 = sphi 0, %s84
      %s86 = sphi 0, %s84
      %s87 = sphi 0, %s86
      %s101 = sphi 0, %s87
      %s109 = sphi 0, %s111
      %s112 = sphi 0, %s109
      %s113 = sphi 0, %s112
      %s129 = sphi 0, %s113
    $region4: #{tpu_custom_call.1} parent=1 // loop_header_branch
      %18 = sbr.rel (%p16) target = $region8
    $region5: #{tpu_custom_call.1} parent=1 // loop_body
      %s20 = ssub.s32 %s15, 1
      %s21 = ssub.s32 %s15, 2
      %s28 = sadd.s32 1, %s23
      %p29 = scmp.ge.s32.totalorder %s28, 1
      %s30 = scalar_select %p29, 0, %s28
      %s31 = sadd.s32 1, %s22
      %s32 = scalar_select %p29, %s31, %s22
      %p33 = scmp.ge.s32.totalorder %s32, 2
      %s34 = scalar_select %p33, 0, %s32
      %s35 = ssub.s32 %s22, %s34
      %s36 = ssub.s32 %s23, %s30
      %s37 = sor.u32 %s35, %s36
      %p38 = scmp.eq.s32.totalorder %s37, 0
      %s40 = sadd.s32 %s39, 1
      %s41 = scalar_select %p38, %s39, %s40
      %p44 = pneg %p38
      %p45 = scmp.eq.s32.totalorder %s15, 1
      %p46 = por %p44, %p45
      %p47 = scmp.ne.s32.totalorder %s39, %s42
      %p48 = scmp.eq.s32.totalorder %s15, 0
      %p49 = por %p47, %p48
      %p50 = scmp.ne.s32.totalorder %s39, %s42
      %p51 = scmp.eq.s32.totalorder %s20, 1
      %p52 = por %p50, %p51
      %p53 = scmp.ne.s32.totalorder %s42, %s43
      %p54 = scmp.eq.s32.totalorder %s20, 0
      %p55 = por %p53, %p54
      %p56 = scmp.ne.s32.totalorder %s42, %s43
      %p57 = scmp.eq.s32.totalorder %s21, 1
      %p58 = por %p56, %p57
      %p60 = scmp.ne.s32.totalorder %s43, %s59
      %p61 = scmp.eq.s32.totalorder %s21, 0
      %p62 = por %p60, %p61
      %s64 = sadd.s32 %s63, 1
      %p67 = scmp.eq.s32.totalorder %s15, 1
      %p68 = scmp.ne.s32.totalorder %s63, %s65
      %p69 = scmp.eq.s32.totalorder %s15, 0
      %p70 = por %p68, %p69
      %p71 = scmp.ne.s32.totalorder %s63, %s65
      %p72 = scmp.eq.s32.totalorder %s20, 1
      %p73 = por %p71, %p72
      %p74 = scmp.ne.s32.totalorder %s65, %s66
      %p75 = scmp.eq.s32.totalorder %s20, 0
      %p76 = por %p74, %p75
      %p77 = scmp.ne.s32.totalorder %s65, %s66
      %p78 = scmp.eq.s32.totalorder %s21, 1
      %p79 = por %p77, %p78
      %p81 = scmp.ne.s32.totalorder %s66, %s80
      %p82 = scmp.eq.s32.totalorder %s21, 0
      %p83 = por %p81, %p82
      %s85 = sadd.s32 %s84, 1
      %p88 = scmp.eq.s32.totalorder %s15, 1
      %p89 = scmp.ne.s32.totalorder %s84, %s86
      %p90 = scmp.eq.s32.totalorder %s15, 0
      %p91 = por %p89, %p90
      %p92 = scmp.ne.s32.totalorder %s84, %s86
      %p93 = scmp.eq.s32.totalorder %s20, 1
      %p94 = por %p92, %p93
      %p95 = scmp.ne.s32.totalorder %s86, %s87
      %p96 = scmp.eq.s32.totalorder %s20, 0
      %p97 = por %p95, %p96
      %p98 = scmp.ne.s32.totalorder %s86, %s87
      %p99 = scmp.eq.s32.totalorder %s21, 1
      %p100 = por %p98, %p99
      %p102 = scmp.ne.s32.totalorder %s87, %s101
      %p103 = scmp.eq.s32.totalorder %s21, 0
      %p104 = por %p102, %p103
      %s105 = ssub.s32 %s22, %s34
      %s106 = ssub.s32 %s23, %s30
      %s107 = sor.u32 %s105, %s106
      %p108 = scmp.eq.s32.totalorder %s107, 0
      %s110 = sadd.s32 %s109, 1
      %s111 = scalar_select %p108, %s109, %s110
      %p114 = pneg %p108
      %p115 = scmp.eq.s32.totalorder %s15, 1
      %p116 = por %p114, %p115
      %p117 = scmp.ne.s32.totalorder %s109, %s112
      %p118 = scmp.eq.s32.totalorder %s15, 0
      %p119 = por %p117, %p118
      %p120 = scmp.ne.s32.totalorder %s109, %s112
      %p121 = scmp.eq.s32.totalorder %s20, 1
      %p122 = por %p120, %p121
      %p123 = scmp.ne.s32.totalorder %s112, %s113
      %p124 = scmp.eq.s32.totalorder %s20, 0
      %p125 = por %p123, %p124
      %p126 = scmp.ne.s32.totalorder %s112, %s113
      %p127 = scmp.eq.s32.totalorder %s21, 1
      %p128 = por %p126, %p127
      %p130 = scmp.ne.s32.totalorder %s113, %s129
      %p131 = scmp.eq.s32.totalorder %s21, 0
      %p132 = por %p130, %p131
      %p133 = scmp.le.s32.totalorder 1, %s15
      %p134 = scmp.lt.s32.totalorder %s15, 3
      %p135 = pnand %p133, %p134
      %p136 = pneg %p135
      // Predicated region
      $region9: #{tpu_custom_call.1} parent=5 // pred_check
        _
      $region10: #{tpu_custom_call.1} parent=5 // pred_check_branch
        %138 = sbr.rel (%p135) target = $region12
      $region11: #{tpu_custom_call.1} parent=5 // pred_region
        %s139 = ssub.s32 %s15, 1
        // Predicated region
        $region13: #{tpu_custom_call.1} parent=11 // pred_check
          %p140 = pneg %p76
        $region14: #{tpu_custom_call.1} parent=11 // pred_check_branch
          %142 = sbr.rel (%p140) target = $region16
        $region15: #{tpu_custom_call.1} parent=11 // pred_region
          _
        $region16: #{tpu_custom_call.1} parent=11 // pred_fallthru
          _
        // Predicated region
        $region17: #{tpu_custom_call.1} parent=11 // pred_check
          %p143 = pneg %p97
        $region18: #{tpu_custom_call.1} parent=11 // pred_check_branch
          %145 = sbr.rel (%p143) target = $region20
        $region19: #{tpu_custom_call.1} parent=11 // pred_region
          _
        $region20: #{tpu_custom_call.1} parent=11 // pred_fallthru
          _
      $region12: #{tpu_custom_call.1} parent=5 // pred_fallthru
        _
      %p146 = scmp.lt.s32.totalorder %s15, 2
      // Predicated region
      $region21: #{tpu_custom_call.1} parent=5 // pred_check
        %p147 = pneg %p146
      $region22: #{tpu_custom_call.1} parent=5 // pred_check_branch
        %149 = sbr.rel (%p147) target = $region24
      $region23: #{tpu_custom_call.1} parent=5 // pred_region
        // Predicated region
        $region25: #{tpu_custom_call.1} parent=23 // pred_check
          %p150 = pneg %p49
        $region26: #{tpu_custom_call.1} parent=23 // pred_check_branch
          %152 = sbr.rel (%p150) target = $region28
        $region27: #{tpu_custom_call.1} parent=23 // pred_region
          %s153 = sand.u32 %s39, 1
          %s154 = scalar_lea.sflag [#allocation3], %s153
          %s155 = sand.u32 %s39, 1
          %s156 = smul.addr %s155, 64
          %s157 = scalar_lea.vmem [#allocation2], %s156
          %s158 = smul.u32 2, %s23
          %160 = vsyncadd %s154, 0
          %s161 = smul.addr %s22, 8
          %s162 = sadd.s32 %s158, %s161
          %s163 = smul.addr %s162, 8
          %s164 = scalar_lea.hbm %s0, %s163
          %s165 = sshll.u32 %s164, 4
          %s166 = int_to_ptr.hbm [resolvable:$true] %s165
          %s167 = sshll.u32 %s157, 4
          %s168 = int_to_ptr.vmem [resolvable:$true] %s167
          %173 = dma.hbm_to_vmem [thread:$0]  %s166, 1024, %s168, %s154, 256, 256, 16
        $region28: #{tpu_custom_call.1} parent=23 // pred_fallthru
          _
      $region24: #{tpu_custom_call.1} parent=5 // pred_fallthru
        _
      %p174 = scmp.le.s32.totalorder 1, %s15
      %p175 = scmp.lt.s32.totalorder %s15, 3
      %p176 = pnand %p174, %p175
      %p177 = pneg %p176
      // Predicated region
      $region29: #{tpu_custom_call.1} parent=5 // pred_check
        _
      $region30: #{tpu_custom_call.1} parent=5 // pred_check_branch
        %179 = sbr.rel (%p176) target = $region32
      $region31: #{tpu_custom_call.1} parent=5 // pred_region
        %s180 = ssub.s32 %s15, 1
        %s181 = sand.u32 %s42, 1
        %s182 = scalar_lea.sflag [#allocation3], %s181
        %s183 = sand.u32 %s42, 1
        %s184 = smul.addr %s183, 64
        %s185 = scalar_lea.vmem [#allocation2], %s184
        // Predicated region
        $region33: #{tpu_custom_call.1} parent=31 // pred_check
          %p186 = pneg %p55
        $region34: #{tpu_custom_call.1} parent=31 // pred_check_branch
          %188 = sbr.rel (%p186) target = $region36
        $region35: #{tpu_custom_call.1} parent=31 // pred_region
          %190 = dma.done %s182, 1024
        $region36: #{tpu_custom_call.1} parent=31 // pred_fallthru
          _
        %s191 = sand.u32 %s42, 1
        %s192 = scalar_lea.sflag [#allocation3], %s191
        %s193 = sand.u32 %s42, 1
        %s194 = smul.addr %s193, 64
        %s195 = scalar_lea.vmem [#allocation2], %s194
        %p196 = pneg %p55
        %p197 = pneg %p52
        %p198 = pneg %p76
        %p199 = pneg %p73
        %p200 = pneg %p97
        %p201 = pneg %p94
        %p202 = pneg %p125
        %p203 = pneg %p122
        %s204 = sand.u32 %s112, 1
        %s205 = scalar_lea.sflag [#allocation4], %s204
        %s206 = sand.u32 %s112, 1
        %s207 = smul.addr %s206, 2
        %s208 = scalar_lea.vmem [#allocation5], %s207
        %s209 = smul.u32 2, %s25
        %s210 = smul.u32 2, %s25
        %v211 = vld [vmem:[%s1] sm:$0xff]
        %v212 = vld [vmem:[%s185] sm:$0xff]
        %v213 = vld [vmem:[%s185 + $0x8] sm:$0xff]
        %v214 = vld [vmem:[%s185 + $0x10] sm:$0xff]
        %v215 = vld [vmem:[%s185 + $0x18] sm:$0xff]
        %v216 = vld [vmem:[%s185 + $0x20] sm:$0xff]
        %v217 = vld [vmem:[%s185 + $0x28] sm:$0xff]
        %v218 = vld [vmem:[%s185 + $0x30] sm:$0xff]
        %v219 = vld [vmem:[%s185 + $0x38] sm:$0xff]
        %v220 = vld [vmem:[%s2] sm:$0xff]
        %222 = vset.pattern.permute.xlu0 0
        %223 = vperm.xlu0 %222, %v220
        %v224 = vpop.permute.xlu0 %223
        %vm226 = vcmask 261120
        %v228 = vsel %vm226, %v211, 0
        %230 = vmatpush.msra.mxu0 0.0
        %231 = vmatpush.msra.mxu0 0.0
        %232 = vmatpush.msra.mxu0 0.0
        %233 = vmatpush.msra.mxu0 0.0
        %234 = vmatpush.msra.mxu0 0.0
        %235 = vmatpush.msra.mxu0 0.0
        %236 = vmatpush.msra.mxu0 0.0
        %237 = vmatpush.msra.mxu0 0.0
        %238 = vmatpush.msra.mxu0 0.0
        %239 = vmatpush.msra.mxu0 0.0
        %240 = vmatpush.msra.mxu0 0.0
        %241 = vmatpush.msra.mxu0 0.0
        %242 = vmatpush.msra.mxu0 %v218
        %243 = vmatpush.msra.mxu0 %v216
        %244 = vmatpush.msra.mxu0 %v214
        %245 = vmatpush.msra.mxu0 %v212
        %246 = vmatmul.f32.gmra.mxu0 %v228
        %v247 = vpop.f32.mrf.mxu0
        %v248 = vadd.f32 %v224, %v247
        %249 = vdwg.mxu0
        %250 = vmatpush.msra.mxu0 0.0
        %251 = vmatpush.msra.mxu0 0.0
        %252 = vmatpush.msra.mxu0 0.0
        %253 = vmatpush.msra.mxu0 0.0
        %254 = vmatpush.msra.mxu0 0.0
        %255 = vmatpush.msra.mxu0 0.0
        %256 = vmatpush.msra.mxu0 0.0
        %257 = vmatpush.msra.mxu0 0.0
        %258 = vmatpush.msra.mxu0 0.0
        %259 = vmatpush.msra.mxu0 0.0
        %260 = vmatpush.msra.mxu0 0.0
        %261 = vmatpush.msra.mxu0 0.0
        %262 = vmatpush.msra.mxu0 %v219
        %263 = vmatpush.msra.mxu0 %v217
        %264 = vmatpush.msra.mxu0 %v215
        %265 = vmatpush.msra.mxu0 %v213
        %266 = vmatmul.f32.gmra.mxu0 %v228
        %v267 = vpop.f32.mrf.mxu0
        %v268 = vadd.f32 %v224, %v267
        %269 = vdwg.mxu0
        %v270 = vrot.slane %v248, 4
        %v271 = vmax.f32 %v248, %v270
        %v272 = vrot.slane %v271, 2
        %v273 = vmax.f32 %v271, %v272
        %v274 = vrot.slane %v273, 1
        %v275 = vmax.f32 %v273, %v274
        %v276 = vrot.slane %v268, 4
        %v277 = vmax.f32 %v268, %v276
        %v278 = vrot.slane %v277, 2
        %v279 = vmax.f32 %v277, %v278
        %v280 = vrot.slane %v279, 1
        %v281 = vmax.f32 %v279, %v280
        %v282 = vlaneseq
        %v283 = vshrl.u32 %v282, 7
        %vm284 = vcmp.eq.f32.partialorder %v248, %v275
        %vm285 = vcmp.eq.f32.partialorder %v268, %v281
        %v286 = vsel %vm284, %v283, 8
        %v287 = vsel %vm285, %v283, 8
        %v288 = vrot.slane %v286, 4
        %vm289 = vcmp.lt.s32.totalorder %v286, %v288
        %v290 = vsel %vm289, %v286, %v288
        %v291 = vrot.slane %v290, 2
        %vm292 = vcmp.lt.s32.totalorder %v290, %v291
        %v293 = vsel %vm292, %v290, %v291
        %v294 = vrot.slane %v293, 1
        %vm295 = vcmp.lt.s32.totalorder %v293, %v294
        %v296 = vsel %vm295, %v293, %v294
        %v297 = vrot.slane %v287, 4
        %vm298 = vcmp.lt.s32.totalorder %v287, %v297
        %v299 = vsel %vm298, %v287, %v297
        %v300 = vrot.slane %v299, 2
        %vm301 = vcmp.lt.s32.totalorder %v299, %v300
        %v302 = vsel %vm301, %v299, %v300
        %v303 = vrot.slane %v302, 1
        %vm304 = vcmp.lt.s32.totalorder %v302, %v303
        %v305 = vsel %vm304, %v302, %v303
        %v306 = vrot.slane %v305, 7
        %vm307 = vcmask 1040384
        %v308 = vsel %vm307, %v296, %v306
        %v309 = vlaneseq
        %vm310 = vcmp.ge.s32.totalorder %v309, 0
        %vm311 = vcmp.lt.s32.totalorder %v309, 256
        %vm312 = vmand %vm310, %vm311
        %313 = vst.msk [vmem:[%s208] sm:$0x3] %vm312, %v308
        %s314 = sand.u32 %s112, 1
        %s315 = scalar_lea.sflag [#allocation4], %s314
        %s316 = sand.u32 %s112, 1
        %s317 = smul.addr %s316, 2
        %s318 = scalar_lea.vmem [#allocation5], %s317
        // Predicated region
        $region37: #{tpu_custom_call.1} parent=31 // pred_check
          %p319 = pneg %p122
        $region38: #{tpu_custom_call.1} parent=31 // pred_check_branch
          %321 = sbr.rel (%p319) target = $region40
        $region39: #{tpu_custom_call.1} parent=31 // pred_region
          %s322 = smul.u32 2, %s25
          %324 = vsyncadd %s315, 0
          %s325 = smul.addr %s24, 2
          %s326 = sadd.s32 %s322, %s325
          %s327 = scalar_lea.hbm %s3, %s326
          %s329 = sshll.u32 %s318, 4
          %s330 = int_to_ptr.vmem [resolvable:$true] %s329
          %s331 = sshll.u32 %s327, 4
          %s332 = int_to_ptr.hbm [resolvable:$true] %s331
          %334 = dma.vmem_to_hbm [thread:$0]  %s330, 32, %s332, %s315
        $region40: #{tpu_custom_call.1} parent=31 // pred_fallthru
          _
      $region32: #{tpu_custom_call.1} parent=5 // pred_fallthru
        _
      %p335 = scmp.le.s32.totalorder 2, %s15
      // Predicated region
      $region41: #{tpu_custom_call.1} parent=5 // pred_check
        %p336 = pneg %p335
      $region42: #{tpu_custom_call.1} parent=5 // pred_check_branch
        %338 = sbr.rel (%p336) target = $region44
      $region43: #{tpu_custom_call.1} parent=5 // pred_region
        %s339 = ssub.s32 %s15, 2
        // Predicated region
        $region45: #{tpu_custom_call.1} parent=43 // pred_check
          %p340 = pneg %p128
        $region46: #{tpu_custom_call.1} parent=43 // pred_check_branch
          %342 = sbr.rel (%p340) target = $region48
        $region47: #{tpu_custom_call.1} parent=43 // pred_region
          %s343 = sand.u32 %s113, 1
          %s344 = scalar_lea.sflag [#allocation4], %s343
          %s345 = sand.u32 %s113, 1
          %s346 = smul.addr %s345, 2
          %s347 = scalar_lea.vmem [#allocation5], %s346
          %349 = dma.done %s344, 32
        $region48: #{tpu_custom_call.1} parent=43 // pred_fallthru
          _
      $region44: #{tpu_custom_call.1} parent=5 // pred_fallthru
        _
    $region6: #{tpu_custom_call.1} parent=1 // loop_footer
      %s19 = sadd.s32 1, %s15
    $region7: #{tpu_custom_call.1} parent=1 // loop_footer_branch
      %14 = sbr.rel target = $region3
    $region8: #{tpu_custom_call.1} parent=1 // loop_exit
      _
    %350 = vsyncpa [#allocation3], 1
    %s351 = scalar_lea.sflag [#allocation3], 1
    %352 = vsyncpa %s351, 1
    %353 = vsyncpa [#allocation4], 1
    %s354 = scalar_lea.sflag [#allocation4], 1
    %355 = vsyncpa %s354, 1

</llo_original>
